<compile_context>
chip_gen: v5e
topology: v5e:2x2
jax: 0.10.0
libtpu: 0.0.40
codegen_flags: <defaults>
</compile_context>

<pallas_src>
import functools

import jax
import jax.numpy as jnp
from jax.experimental import pallas as pl
from jax.experimental.pallas import tpu as pltpu


TARGET_TILE_B = 2048  # amortizes ~0.35 us/step grid overhead; VMEM stays tiny


# ---------------------------------------------------------------------------
# Kernel: 3 matmuls + relu/relu/sigmoid, fully VMEM-resident per batch tile.
#   x_ref : (TILE_B, d_in)   bf16   -- one batch tile
#   w1_ref: (d_in, h1)       bf16   -- block-diagonal packed layer-1 weights
#   b1_ref: (1, h1)          f32
#   w2_ref: (h1, h2) bf16,  b2_ref: (1, h2) f32
#   w3_ref: (h2, d_out) bf16, b3_ref: (1, d_out) f32
#   out_ref: (TILE_B, d_out) f32
# ---------------------------------------------------------------------------
def _giraffe_kernel(x_ref, w1_ref, b1_ref, w2_ref, b2_ref, w3_ref, b3_ref,
                    out_ref):
    f32 = jnp.float32
    bf16 = jnp.bfloat16
    # Layer 1 (block-diagonal == the three split linears + concat), relu.
    h1 = jnp.maximum(
        jnp.dot(x_ref[...], w1_ref[...], preferred_element_type=f32)
        + b1_ref[...], 0.0)
    # Layer 2, relu.  bf16 operands, f32 accumulation.
    h2 = jnp.maximum(
        jnp.dot(h1.astype(bf16), w2_ref[...], preferred_element_type=f32)
        + b2_ref[...], 0.0)
    # Layer 3, sigmoid.
    logits = (jnp.dot(h2.astype(bf16), w3_ref[...], preferred_element_type=f32)
              + b3_ref[...])
    out_ref[...] = jax.nn.sigmoid(logits)


def _choose_tile_b(batch):
    """Batch tile selection.

    Small batch: one full-extent tile (legal for any size; the call is
    prologue-bound anyway).  Large batch: >= 2 tiles (v7x has 2 TensorCores),
    each as big as possible up to TARGET_TILE_B, a multiple of 16 (bf16
    sublane packing), and exactly dividing the batch when possible so the
    wrapper never has to jnp.pad x (that pad is an extra HBM read+write of x
    outside the kernel).  Prefer an even tile count for v7x core balance.
    """
    if batch < 1024:
        return batch
    upper = min(TARGET_TILE_B, batch // 2)
    upper -= upper % 16
    for want_even in (True, False):
        for t in range(upper, 15, -16):
            if batch % t == 0 and (not want_even or (batch // t) % 2 == 0):
                return t
    return upper  # no clean divisor: ragged tail, minimal pad


def _vmem_limit_bytes(tile_b, d_in, h1_dim, h2_dim, d_out):
    """Raise the scoped-VMEM limit only if the double-buffered tiles would
    exceed v5e's 16 MiB default (with headroom)."""
    x_buf = tile_b * d_in * 2            # bf16 input tile
    out_buf = tile_b * d_out * 4         # f32 output tile
    weights = (d_in * h1_dim + h1_dim * h2_dim + h2_dim * d_out) * 2 \
        + (h1_dim + h2_dim + d_out) * 4
    est = 2 * (x_buf + out_buf) + 2 * weights + (1 << 20)
    if est <= 12 * 1024 * 1024:
        return None
    return min(2 * est, 48 * 1024 * 1024)  # stay under v7x's 64 MiB physical


def pack_giraffe_params(params, *, gf, pc, sc):
    """One-time packing: block-diagonal W1, concatenated b1, bf16 weight casts.
    Call once (outside the per-step forward) and reuse the result."""
    (w1a, b1a, w1b, b1b, w1c, b1c, w2, b2, w3, b3) = params
    f32, bf16 = jnp.float32, jnp.bfloat16

    h1a, h1b, h1c = w1a.shape[1], w1b.shape[1], w1c.shape[1]
    h1_dim = h1a + h1b + h1c
    d_in = gf + pc + sc
    assert w1a.shape[0] == gf and w1b.shape[0] == pc and w1c.shape[0] == sc
    assert w2.shape[0] == h1_dim and w3.shape[0] == w2.shape[1]

    w1_bd = jnp.zeros((d_in, h1_dim), f32)
    w1_bd = w1_bd.at[:gf, :h1a].set(w1a)
    w1_bd = w1_bd.at[gf:gf + pc, h1a:h1a + h1b].set(w1b)
    w1_bd = w1_bd.at[gf + pc:, h1a + h1b:].set(w1c)
    b1 = jnp.concatenate([b1a, b1b, b1c], axis=1).astype(f32)   # (1, h1)

    return (w1_bd.astype(bf16), b1,
            w2.astype(bf16), b2.astype(f32),
            w3.astype(bf16), b3.astype(f32))


@jax.jit
def giraffe_forward(x, packed):
    """Fused Pallas forward.  `packed` comes from pack_giraffe_params()."""
    w1, b1, w2, b2, w3, b3 = packed
    B, d_in = x.shape
    h1_dim = w1.shape[1]
    h2_dim = w2.shape[1]
    d_out = w3.shape[1]
    assert w1.shape[0] == d_in

    tile_b = _choose_tile_b(B)
    n_tiles = pl.cdiv(B, tile_b)
    b_pad = n_tiles * tile_b

    x_bf = x.astype(jnp.bfloat16)
    if b_pad != B:  # only for batches with no clean divisor (rare by design)
        x_bf = jnp.pad(x_bf, ((0, b_pad - B), (0, 0)))

    const = lambda i: (0, 0)  # weights resident across the batch grid

    out = pl.pallas_call(
        _giraffe_kernel,
        out_shape=jax.ShapeDtypeStruct((b_pad, d_out), jnp.float32),
        grid_spec=pltpu.PrefetchScalarGridSpec(
            num_scalar_prefetch=0,
            grid=(n_tiles,),
            in_specs=[
                pl.BlockSpec((tile_b, d_in), lambda i: (i, 0)),   # x tile
                pl.BlockSpec((d_in, h1_dim), const),              # W1 blockdiag
                pl.BlockSpec((1, h1_dim), const),                 # b1
                pl.BlockSpec((h1_dim, h2_dim), const),            # W2
                pl.BlockSpec((1, h2_dim), const),                 # b2
                pl.BlockSpec((h2_dim, d_out), const),             # W3
                pl.BlockSpec((1, d_out), const),                  # b3
            ],
            out_specs=pl.BlockSpec((tile_b, d_out), lambda i: (i, 0)),
        ),
        compiler_params=pltpu.CompilerParams(
            dimension_semantics=("parallel",),
            vmem_limit_bytes=_vmem_limit_bytes(tile_b, d_in, h1_dim, h2_dim,
                                               d_out),
        ),
    )(x_bf, w1, b1, w2, b2, w3, b3)

    return out[:B] if b_pad != B else out


def _linear_params(key, fan_in, fan_out):
    """Deterministic PyTorch-style uniform(-1/sqrt(fan_in), 1/sqrt(fan_in))
    init.  Weight is returned already transposed to (in, out)."""
    kw, kb = jax.random.split(key)
    bound = 1.0 / jnp.sqrt(jnp.float32(fan_in))
    w = jax.random.uniform(kw, (fan_in, fan_out), jnp.float32, -bound, bound)
    b = jax.random.uniform(kb, (1, fan_out), jnp.float32, -bound, bound)
    return w, b


if __name__ == "__main__":
    # Small, module-consistent shapes (Config stand-ins).
    gf, pc, sc = 16, 32, 24          # global / piece-centric / square-centric
    h1a, h1b, h1c = 16, 32, 24
    h2, d_out = 64, 8
    d_in = gf + pc + sc
    batch = 8

    root = jax.random.PRNGKey(0)
    kx, k1a, k1b, k1c, k2, k3 = jax.random.split(root, 6)

    x = jax.random.normal(kx, (batch, d_in), jnp.float32)

    w1a, b1a = _linear_params(k1a, gf, h1a)
    w1b, b1b = _linear_params(k1b, pc, h1b)
    w1c, b1c = _linear_params(k1c, sc, h1c)
    w2, b2 = _linear_params(k2, h1a + h1b + h1c, h2)
    w3, b3 = _linear_params(k3, h2, d_out)
    params = (w1a, b1a, w1b, b1b, w1c, b1c, w2, b2, w3, b3)

    packed = pack_giraffe_params(params, gf=gf, pc=pc, sc=sc)  # hoisted, once
    out = giraffe_forward(x, packed)
    out = jax.block_until_ready(out)

    # Pure-JAX f32 reference of the same (intended) semantics.
    x1, x2, x3 = x[:, :gf], x[:, gf:gf + pc], x[:, gf + pc:gf + pc + sc]
    r1a = jnp.maximum(x1 @ w1a + b1a, 0.0)
    r1b = jnp.maximum(x2 @ w1b + b1b, 0.0)
    r1c = jnp.maximum(x3 @ w1c + b1c, 0.0)
    r1 = jnp.concatenate([r1a, r1b, r1c], axis=1)
    r2 = jnp.maximum(r1 @ w2 + b2, 0.0)
    ref = jax.nn.sigmoid(r2 @ w3 + b3)

    assert out.shape == (batch, d_out)
    # bf16 matmul operands with f32 accumulation -> loosened tolerance.
    assert jnp.allclose(out, ref, atol=3e-2, rtol=3e-2)
    print("KERNEL_OK")
</pallas_src>

<mosaic_0001>
module attributes {stable_mosaic.version = 11 : i64} {
  func.func @_giraffe_kernel(%arg0: i32, %arg1: memref<8x72xbf16, #tpu.memory_space<vmem>>, %arg2: memref<72x72xbf16, #tpu.memory_space<vmem>>, %arg3: memref<1x72xf32, #tpu.memory_space<vmem>>, %arg4: memref<72x64xbf16, #tpu.memory_space<vmem>>, %arg5: memref<1x64xf32, #tpu.memory_space<vmem>>, %arg6: memref<64x8xbf16, #tpu.memory_space<vmem>>, %arg7: memref<1x8xf32, #tpu.memory_space<vmem>>, %arg8: memref<8x8xf32, #tpu.memory_space<vmem>>) attributes {dimension_semantics = [#tpu.dimension_semantics<parallel>], iteration_bounds = array<i64: 1>, scalar_prefetch = 0 : i64, scratch_operands = 0 : i64, tpu.core_type = #tpu.core_type<tc>, window_params = [{transform_indices = @transform_0, window_bounds = array<i64: 8, 72>}, {pipeline_mode = #tpu.pipeline_mode<synchronous>, transform_indices = @transform_1, window_bounds = array<i64: 72, 72>}, {pipeline_mode = #tpu.pipeline_mode<synchronous>, transform_indices = @transform_2, window_bounds = array<i64: 1, 72>}, {pipeline_mode = #tpu.pipeline_mode<synchronous>, transform_indices = @transform_3, window_bounds = array<i64: 72, 64>}, {pipeline_mode = #tpu.pipeline_mode<synchronous>, transform_indices = @transform_4, window_bounds = array<i64: 1, 64>}, {pipeline_mode = #tpu.pipeline_mode<synchronous>, transform_indices = @transform_5, window_bounds = array<i64: 64, 8>}, {pipeline_mode = #tpu.pipeline_mode<synchronous>, transform_indices = @transform_6, window_bounds = array<i64: 1, 8>}, {transform_indices = @transform_7, window_bounds = array<i64: 8, 8>}]} {
    %c0 = arith.constant 0 : index
    %c0_0 = arith.constant 0 : index
    %0 = vector.load %arg1[%c0, %c0_0] : memref<8x72xbf16, #tpu.memory_space<vmem>>, vector<8x72xbf16>
    %c0_1 = arith.constant 0 : index
    %c0_2 = arith.constant 0 : index
    %1 = vector.load %arg2[%c0_1, %c0_2] : memref<72x72xbf16, #tpu.memory_space<vmem>>, vector<72x72xbf16>
    %cst = arith.constant dense<0.000000e+00> : vector<8x72xf32>
    %2 = tpu.matmul %0, %1, %cst {dimension_numbers = #tpu.dot_dimension_numbers<[1], [0], [0], [1], [0, 0, 1, 1], [], []>} : vector<8x72xbf16>, vector<72x72xbf16>, vector<8x72xf32> -> vector<8x72xf32>
    %c0_3 = arith.constant 0 : index
    %c0_4 = arith.constant 0 : index
    %3 = vector.load %arg3[%c0_3, %c0_4] : memref<1x72xf32, #tpu.memory_space<vmem>>, vector<1x72xf32>
    %4 = vector.broadcast %3 : vector<1x72xf32> to vector<8x72xf32>
    %5 = arith.addf %2, %4 : vector<8x72xf32>
    %cst_5 = arith.constant 0.000000e+00 : f32
    %6 = vector.broadcast %cst_5 : f32 to vector<8x72xf32>
    %7 = arith.maximumf %5, %6 : vector<8x72xf32>
    %8 = arith.truncf %7 : vector<8x72xf32> to vector<8x72xbf16>
    %c0_6 = arith.constant 0 : index
    %c0_7 = arith.constant 0 : index
    %9 = vector.load %arg4[%c0_6, %c0_7] : memref<72x64xbf16, #tpu.memory_space<vmem>>, vector<72x64xbf16>
    %cst_8 = arith.constant dense<0.000000e+00> : vector<8x64xf32>
    %10 = tpu.matmul %8, %9, %cst_8 {dimension_numbers = #tpu.dot_dimension_numbers<[1], [0], [0], [1], [0, 0, 1, 1], [], []>} : vector<8x72xbf16>, vector<72x64xbf16>, vector<8x64xf32> -> vector<8x64xf32>
    %c0_9 = arith.constant 0 : index
    %c0_10 = arith.constant 0 : index
    %11 = vector.load %arg5[%c0_9, %c0_10] : memref<1x64xf32, #tpu.memory_space<vmem>>, vector<1x64xf32>
    %12 = vector.broadcast %11 : vector<1x64xf32> to vector<8x64xf32>
    %13 = arith.addf %10, %12 : vector<8x64xf32>
    %cst_11 = arith.constant 0.000000e+00 : f32
    %14 = vector.broadcast %cst_11 : f32 to vector<8x64xf32>
    %15 = arith.maximumf %13, %14 : vector<8x64xf32>
    %16 = arith.truncf %15 : vector<8x64xf32> to vector<8x64xbf16>
    %c0_12 = arith.constant 0 : index
    %c0_13 = arith.constant 0 : index
    %17 = vector.load %arg6[%c0_12, %c0_13] : memref<64x8xbf16, #tpu.memory_space<vmem>>, vector<64x8xbf16>
    %cst_14 = arith.constant dense<0.000000e+00> : vector<8x8xf32>
    %18 = tpu.matmul %16, %17, %cst_14 {dimension_numbers = #tpu.dot_dimension_numbers<[1], [0], [0], [1], [0, 0, 1, 1], [], []>} : vector<8x64xbf16>, vector<64x8xbf16>, vector<8x8xf32> -> vector<8x8xf32>
    %c0_15 = arith.constant 0 : index
    %c0_16 = arith.constant 0 : index
    %19 = vector.load %arg7[%c0_15, %c0_16] : memref<1x8xf32, #tpu.memory_space<vmem>>, vector<1x8xf32>
    %20 = vector.broadcast %19 : vector<1x8xf32> to vector<8x8xf32>
    %21 = arith.addf %18, %20 : vector<8x8xf32>
    %22 = arith.negf %21 : vector<8x8xf32>
    %23 = math.exp %22 : vector<8x8xf32>
    %cst_17 = arith.constant 1.000000e+00 : f32
    %24 = vector.broadcast %cst_17 : f32 to vector<8x8xf32>
    %25 = arith.addf %24, %23 : vector<8x8xf32>
    %26 = arith.divf %24, %25 : vector<8x8xf32>
    %c0_18 = arith.constant 0 : index
    %c0_19 = arith.constant 0 : index
    %27 = vector.load %arg8[%c0_18, %c0_19] : memref<8x8xf32, #tpu.memory_space<vmem>>, vector<8x8xf32>
    tpu.vector_store %arg8[%c0_18, %c0_19], %26 {strides = array<i32>} : memref<8x8xf32, #tpu.memory_space<vmem>>, vector<8x8xf32>,
    return
  }
  func.func @transform_0(%arg0: i32) -> (i32, i32) {
    %c0_i32 = arith.constant 0 : i32
    %c0_i32_0 = arith.constant 0 : i32
    return %arg0, %c0_i32 : i32, i32
  }
  func.func @transform_1(%arg0: i32) -> (i32, i32) {
    %c0_i32 = arith.constant 0 : i32
    %c0_i32_0 = arith.constant 0 : i32
    %c0_i32_1 = arith.constant 0 : i32
    return %c0_i32, %c0_i32_0 : i32, i32
  }
  func.func @transform_2(%arg0: i32) -> (i32, i32) {
    %c0_i32 = arith.constant 0 : i32
    %c0_i32_0 = arith.constant 0 : i32
    %c0_i32_1 = arith.constant 0 : i32
    return %c0_i32, %c0_i32_0 : i32, i32
  }
  func.func @transform_3(%arg0: i32) -> (i32, i32) {
    %c0_i32 = arith.constant 0 : i32
    %c0_i32_0 = arith.constant 0 : i32
    %c0_i32_1 = arith.constant 0 : i32
    return %c0_i32, %c0_i32_0 : i32, i32
  }
  func.func @transform_4(%arg0: i32) -> (i32, i32) {
    %c0_i32 = arith.constant 0 : i32
    %c0_i32_0 = arith.constant 0 : i32
    %c0_i32_1 = arith.constant 0 : i32
    return %c0_i32, %c0_i32_0 : i32, i32
  }
  func.func @transform_5(%arg0: i32) -> (i32, i32) {
    %c0_i32 = arith.constant 0 : i32
    %c0_i32_0 = arith.constant 0 : i32
    %c0_i32_1 = arith.constant 0 : i32
    return %c0_i32, %c0_i32_0 : i32, i32
  }
  func.func @transform_6(%arg0: i32) -> (i32, i32) {
    %c0_i32 = arith.constant 0 : i32
    %c0_i32_0 = arith.constant 0 : i32
    %c0_i32_1 = arith.constant 0 : i32
    return %c0_i32, %c0_i32_0 : i32, i32
  }
  func.func @transform_7(%arg0: i32) -> (i32, i32) {
    %c0_i32 = arith.constant 0 : i32
    %c0_i32_0 = arith.constant 0 : i32
    return %arg0, %c0_i32 : i32, i32
  }
}

</mosaic_0001>

<llo_original>
// kernel: giraffe_forward.1
$region0: #{giraffe_forward.1}
  #allocation0 [shape = 'u32[]', space=smem, size = 0x4, offset = 0x4, fixed_abs, tag = 'smem constant byte address 0x4 - core index']
  #allocation1 [shape = 'u32[72,128]{1,0:T(1,128)}', space=vmem, size = 0x9000, scoped, tag = 'internal scratch']
  %s0 = inlined_call_operand.vmem [shape: bf16[8,72], index: 0, kind: input, shape index: {}]
  %s1 = inlined_call_operand.vmem [shape: bf16[72,72], index: 1, kind: input, shape index: {}]
  %s2 = inlined_call_operand.vmem [shape: f32[1,72], index: 2, kind: input, shape index: {}]
  %s3 = inlined_call_operand.vmem [shape: bf16[72,64], index: 3, kind: input, shape index: {}]
  %s4 = inlined_call_operand.vmem [shape: f32[1,64], index: 4, kind: input, shape index: {}]
  %s5 = inlined_call_operand.vmem [shape: bf16[64,8], index: 5, kind: input, shape index: {}]
  %s6 = inlined_call_operand.vmem [shape: f32[1,8], index: 6, kind: input, shape index: {}]
  %s7 = inlined_call_operand.hbm [shape: f32[8,8], index: 7, kind: output, shape index: {}]
  %s8 = sld [smem:[#allocation0]]
  $region38: #{giraffe_forward.1} parent=0
    _
  %s10 = ssub.s32 1, %s8
  %s11 = scalar_select 0, %s10, %s8
  $region1: #{giraffe_forward.1} parent=0
    #allocation2 [shape = 'u8[4096]{0}', space=vmem, size = 0x1000, scoped, tag = 'output window, operand 0, single buffered']
    #allocation3 [shape = 's32[1]{0}', space=sflag, size = 0x4, scoped, tag = 'scoped memory for giraffe_forward.1']
    %12 = vsyncpa [#allocation3], 0
    // Predicated region
    $region2: #{giraffe_forward.1} parent=1 // pred_check
      _
    $region3: #{giraffe_forward.1} parent=1 // pred_check_branch
      %14 = sbr.rel (0) target = $region5
    $region4: #{giraffe_forward.1} parent=1 // pred_region
      _
    $region5: #{giraffe_forward.1} parent=1 // pred_fallthru
      _
    // Predicated region
    $region6: #{giraffe_forward.1} parent=1 // pred_check
      _
    $region7: #{giraffe_forward.1} parent=1 // pred_check_branch
      %16 = sbr.rel (0) target = $region9
    $region8: #{giraffe_forward.1} parent=1 // pred_region
      _
    $region9: #{giraffe_forward.1} parent=1 // pred_fallthru
      _
    // Predicated region
    $region10: #{giraffe_forward.1} parent=1 // pred_check
      _
    $region11: #{giraffe_forward.1} parent=1 // pred_check_branch
      %18 = sbr.rel (0) target = $region13
    $region12: #{giraffe_forward.1} parent=1 // pred_region
      _
    $region13: #{giraffe_forward.1} parent=1 // pred_fallthru
      _
    // Predicated region
    $region14: #{giraffe_forward.1} parent=1 // pred_check
      _
    $region15: #{giraffe_forward.1} parent=1 // pred_check_branch
      %20 = sbr.rel (0) target = $region17
    $region16: #{giraffe_forward.1} parent=1 // pred_region
      _
    $region17: #{giraffe_forward.1} parent=1 // pred_fallthru
      _
    // Predicated region
    $region18: #{giraffe_forward.1} parent=1 // pred_check
      _
    $region19: #{giraffe_forward.1} parent=1 // pred_check_branch
      %22 = sbr.rel (0) target = $region21
    $region20: #{giraffe_forward.1} parent=1 // pred_region
      _
    $region21: #{giraffe_forward.1} parent=1 // pred_fallthru
      _
    // Predicated region
    $region22: #{giraffe_forward.1} parent=1 // pred_check
      _
    $region23: #{giraffe_forward.1} parent=1 // pred_check_branch
      %24 = sbr.rel (0) target = $region25
    $region24: #{giraffe_forward.1} parent=1 // pred_region
      _
    $region25: #{giraffe_forward.1} parent=1 // pred_fallthru
      _
    // Predicated region
    $region26: #{giraffe_forward.1} parent=1 // pred_check
      _
    $region27: #{giraffe_forward.1} parent=1 // pred_check_branch
      %26 = sbr.rel (0) target = $region29
    $region28: #{giraffe_forward.1} parent=1 // pred_region
      _
    $region29: #{giraffe_forward.1} parent=1 // pred_fallthru
      _
    %v28 = vld [vmem:[%s0] sm:$0xf]
    %v29 = vld [vmem:[%s1] sm:$0xf]
    %v30 = vld [vmem:[%s1 + $0x4] sm:$0xf]
    %v31 = vld [vmem:[%s1 + $0x8] sm:$0xf]
    %v32 = vld [vmem:[%s1 + $0xc] sm:$0xf]
    %v33 = vld [vmem:[%s1 + $0x10] sm:$0xf]
    %v34 = vld [vmem:[%s1 + $0x14] sm:$0xf]
    %v35 = vld [vmem:[%s1 + $0x18] sm:$0xf]
    %v36 = vld [vmem:[%s1 + $0x1c] sm:$0xf]
    %v37 = vld [vmem:[%s1 + $0x20] sm:$0xf]
    %v38 = vld [vmem:[%s2] sm:$0x1]
    %v40 = vperm.slane %v38, 0
    %v51 = vunpack.c.l.b16 %v29
    %v52 = vunpack.c.l.b16 %v30
    %v53 = vunpack.c.l.b16 %v31
    %v54 = vunpack.c.l.b16 %v32
    %v55 = vunpack.c.l.b16 %v33
    %v56 = vunpack.c.l.b16 %v34
    %v57 = vunpack.c.l.b16 %v35
    %v58 = vunpack.c.l.b16 %v36
    %v59 = vunpack.c.l.b16 %v37
    %v60 = vpack.c.b16 %v52, %v51
    %v61 = vpack.c.b16 %v54, %v53
    %v62 = vpack.c.b16 %v56, %v55
    %v63 = vpack.c.b16 %v58, %v57
    %v64 = vpack.c.b16 %v59, %v59
    %vm69 = vcmask 588800
    %v71 = vsel %vm69, %v28, 0
    %vm73 = vcmask 1043456
    %v75 = vsel %vm73, %v64, 0
    %77 = vmatpush.bf16.msra.mxu0 0
    %78 = vmatpush.bf16.msra.mxu0 0
    %79 = vmatpush.bf16.msra.mxu0 0
    %80 = vmatpush.bf16.msra.mxu0 %v75
    %81 = vmatpush.bf16.msra.mxu0 %v63
    %82 = vmatpush.bf16.msra.mxu0 %v62
    %83 = vmatpush.bf16.msra.mxu0 %v61
    %84 = vmatpush.bf16.msra.mxu0 %v60
    %85 = vmatmul.bf16.gmra.mxu0 %v71
    %v86 = vpop.f32.mrf.mxu0
    %v87 = vadd.f32 %v40, %v86
    %v88 = vpop.f32.mrf.mxu0
    %89 = vdwg.mxu0
    %v90 = vmax.f32 %v87, 0.0
    %v91 = vpack.c.bf16 %v90, %v90
    %v92 = vld [vmem:[%s3] sm:$0xf]
    %v93 = vld [vmem:[%s3 + $0x4] sm:$0xf]
    %v94 = vld [vmem:[%s3 + $0x8] sm:$0xf]
    %v95 = vld [vmem:[%s3 + $0xc] sm:$0xf]
    %v96 = vld [vmem:[%s3 + $0x10] sm:$0xf]
    %v97 = vld [vmem:[%s3 + $0x14] sm:$0xf]
    %v98 = vld [vmem:[%s3 + $0x18] sm:$0xf]
    %v99 = vld [vmem:[%s3 + $0x1c] sm:$0xf]
    %v100 = vld [vmem:[%s3 + $0x20] sm:$0xf]
    %v101 = vld [vmem:[%s4] sm:$0x1]
    %v103 = vperm.slane %v101, 0
    %v114 = vunpack.c.l.b16 %v92
    %v115 = vunpack.c.l.b16 %v93
    %v116 = vunpack.c.l.b16 %v94
    %v117 = vunpack.c.l.b16 %v95
    %v118 = vunpack.c.l.b16 %v96
    %v119 = vunpack.c.l.b16 %v97
    %v120 = vunpack.c.l.b16 %v98
    %v121 = vunpack.c.l.b16 %v99
    %v122 = vunpack.c.l.b16 %v100
    %v123 = vpack.c.b16 %v115, %v114
    %v124 = vpack.c.b16 %v117, %v116
    %v125 = vpack.c.b16 %v119, %v118
    %v126 = vpack.c.b16 %v121, %v120
    %v127 = vpack.c.b16 %v122, %v122
    %v133 = vsel %vm69, %v91, 0
    %v136 = vsel %vm73, %v127, 0
    %138 = vmatpush.bf16.msra.mxu0 0
    %139 = vmatpush.bf16.msra.mxu0 0
    %140 = vmatpush.bf16.msra.mxu0 0
    %141 = vmatpush.bf16.msra.mxu0 %v136
    %142 = vmatpush.bf16.msra.mxu0 %v126
    %143 = vmatpush.bf16.msra.mxu0 %v125
    %144 = vmatpush.bf16.msra.mxu0 %v124
    %145 = vmatpush.bf16.msra.mxu0 %v123
    %146 = vmatmul.bf16.gmra.mxu0 %v133
    %v147 = vpop.f32.mrf.mxu0
    %v148 = vadd.f32 %v103, %v147
    %v149 = vpop.f32.mrf.mxu0
    %150 = vdwg.mxu0
    %v151 = vmax.f32 %v148, 0.0
    %v152 = vpack.c.bf16 %v151, %v151
    %v153 = vld [vmem:[%s5] sm:$0xf]
    %v154 = vld [vmem:[%s5 + $0x4] sm:$0xf]
    %v155 = vld [vmem:[%s5 + $0x8] sm:$0xf]
    %v156 = vld [vmem:[%s5 + $0xc] sm:$0xf]
    %v157 = vld [vmem:[%s5 + $0x10] sm:$0xf]
    %v158 = vld [vmem:[%s5 + $0x14] sm:$0xf]
    %v159 = vld [vmem:[%s5 + $0x18] sm:$0xf]
    %v160 = vld [vmem:[%s5 + $0x1c] sm:$0xf]
    %v161 = vld [vmem:[%s6] sm:$0x1]
    %v163 = vperm.slane %v161, 0
    %v173 = vunpack.c.l.b16 %v153
    %v174 = vunpack.c.l.b16 %v154
    %v175 = vunpack.c.l.b16 %v155
    %v176 = vunpack.c.l.b16 %v156
    %v177 = vunpack.c.l.b16 %v157
    %v178 = vunpack.c.l.b16 %v158
    %v179 = vunpack.c.l.b16 %v159
    %v180 = vunpack.c.l.b16 %v160
    %v181 = vpack.c.b16 %v174, %v173
    %v182 = vpack.c.b16 %v176, %v175
    %v183 = vpack.c.b16 %v178, %v177
    %v184 = vpack.c.b16 %v180, %v179
    %vm189 = vcmask 523264
    %v191 = vsel %vm189, %v152, 0
    %193 = vmatpush.bf16.msra.mxu0 0
    %194 = vmatpush.bf16.msra.mxu0 0
    %195 = vmatpush.bf16.msra.mxu0 0
    %196 = vmatpush.bf16.msra.mxu0 0
    %197 = vmatpush.bf16.msra.mxu0 %v184
    %198 = vmatpush.bf16.msra.mxu0 %v183
    %199 = vmatpush.bf16.msra.mxu0 %v182
    %200 = vmatpush.bf16.msra.mxu0 %v181
    %201 = vmatmul.bf16.gmra.mxu0 %v191
    %v202 = vpop.f32.mrf.mxu0
    %v203 = vadd.f32 %v163, %v202
    %v204 = vpop.f32.mrf.mxu0
    %205 = vdwg.mxu0
    %v206 = vxor.u32 %v203, 2147483648
    %v207 = vmul.f32 %v206, 1.442695
    %v208 = vpow.pop %v207
    %v209 = vadd.f32 %v208, 1.0
    %v210 = vrcp.pop %v209
    %v211 = vmul.f32 %v209, %v210
    %v212 = vsub.f32 1.0, %v211
    %v213 = vmul.f32 %v210, %v212
    %v214 = vadd.f32 %v210, %v213
    %vm215 = vweird.f32 %v209
    %vm216 = vweird.f32 %v210
    %vm217 = vmor %vm215, %vm216
    %v218 = vsel %vm217, %v210, %v214
    %v219 = vand.u32 2147483647, %v209
    %vm220 = vcmp.eq.f32.partialorder %v219, 8.507059e+37
    %v221 = vand.u32 %v209, 2147483648
    %v222 = vor.u32 1.1754944e-38, %v221
    %v223 = vsel %vm220, %v222, %v218
    %v224 = vmul.f32 1.0, %v223
    %vm225 = vcmask 64512
    %226 = vst.msk [vmem:[#allocation2] sm:$0xff] %vm225, %v224
    // Predicated region
    $region30: #{giraffe_forward.1} parent=1 // pred_check
      _
    $region31: #{giraffe_forward.1} parent=1 // pred_check_branch
      %228 = sbr.rel (0) target = $region33
    $region32: #{giraffe_forward.1} parent=1 // pred_region
      %230 = vsyncadd [#allocation3], 0
      %s232 = sshll.u32 [#allocation2], 4
      %s233 = int_to_ptr.vmem [resolvable:$true] %s232
      %s234 = sshll.u32 %s7, 4
      %s235 = int_to_ptr.hbm [resolvable:$true] %s234
      %237 = dma.vmem_to_hbm [thread:$0]  %s233, 128, %s235, [#allocation3]
    $region33: #{giraffe_forward.1} parent=1 // pred_fallthru
      _
    // Predicated region
    $region34: #{giraffe_forward.1} parent=1 // pred_check
      _
    $region35: #{giraffe_forward.1} parent=1 // pred_check_branch
      %239 = sbr.rel (0) target = $region37
    $region36: #{giraffe_forward.1} parent=1 // pred_region
      %241 = dma.done [#allocation3], 128
    $region37: #{giraffe_forward.1} parent=1 // pred_fallthru
      _
    %242 = vsyncpa [#allocation3], 1

</llo_original>
